<compile_context>
chip_gen: v7x
topology: tpu7x:2x2x1
jax: 0.10.0
libtpu: 0.0.40
codegen_flags: <defaults>
</compile_context>

<pallas_src>
import jax
import jax.numpy as jnp
from jax import lax
from jax.experimental import pallas as pl
from jax.experimental.pallas import tpu as pltpu


def autoencoder_kernel(xt_ref, w1_ref, b1_ref, w2_ref, b2_ref,
                       enct_ref, dect_ref):
    # Batch-on-lanes layout: every activation tile has the batch on the
    # 128-lane axis, so loads/stores are lane-dense and the MXU result
    # dimension (N = TB) is wide instead of 16/32.
    xt = xt_ref[...]                                    # (D, TB)

    # encoder: encT = relu(W1 @ xT + b1)   (H, D) x (D, TB) -> (H, TB)
    h = lax.dot_general(w1_ref[...], xt,
                        (((1,), (0,)), ((), ())),
                        preferred_element_type=jnp.float32)
    enc = jnp.maximum(h + b1_ref[...], 0.0)             # b1: (H, 1), lane-bcast
    enct_ref[...] = enc.astype(enct_ref.dtype)

    # decoder: decT = sigmoid(W2 @ encT + b2)   (D, H) x (H, TB) -> (D, TB)
    d = lax.dot_general(w2_ref[...], enc,
                        (((1,), (0,)), ((), ())),
                        preferred_element_type=jnp.float32)
    d = d + b2_ref[...]                                  # b2: (D, 1)
    # Exact sigmoid: HBM-bound kernel, approx reciprocal buys no wall-clock.
    dec = 1.0 / (1.0 + jnp.exp(-d))
    dect_ref[...] = dec.astype(dect_ref.dtype)


def _pick_batch_tile(B, tb_max):
    # Small batch: one full-batch step (block == full array dim is always
    # layout-legal regardless of the 128-lane divisibility rule).
    if B <= 512:
        return B
    # Lane axis blocks must be multiples of 128.  Guarantee >= 4 grid steps
    # (>= 2 per TensorCore on v7x) so double-buffering actually overlaps,
    # and cap per-step rows at tb_max to bound VMEM.
    tb = (B // 4) // 128 * 128
    return max(128, min(tb, tb_max))


def autoencoder_forward_t(xt, w1, b1, w2, b2, *, tb_max=16384):
    """Batch-on-lanes entry point (no transposes anywhere).

    xt: (input_size, B).  w1: (hidden, input), w2: (input, hidden) — torch
    nn.Linear (out, in) layout.  Returns (encT (hidden, B), decT (input, B)).
    """
    D, B = xt.shape
    H = w1.shape[0]

    TB = _pick_batch_tile(B, tb_max)
    grid = (pl.cdiv(B, TB),)

    # Biases as (feat, 1) columns so they broadcast along the lane (batch) axis.
    b1_col = b1.reshape(H, 1)
    b2_col = b2.reshape(D, 1)

    itemsize = jnp.dtype(xt.dtype).itemsize
    cost = pl.CostEstimate(
        flops=4 * B * D * H,                          # two matmuls, 2*B*D*H each
        transcendentals=B * D,                        # exp in sigmoid
        bytes_accessed=(xt.size + B * H + B * D
                        + w1.size + w2.size + b1.size + b2.size) * itemsize,
    )

    return pl.pallas_call(
        autoencoder_kernel,
        out_shape=(jax.ShapeDtypeStruct((H, B), xt.dtype),
                   jax.ShapeDtypeStruct((D, B), xt.dtype)),
        grid=grid,
        in_specs=[
            pl.BlockSpec((D, TB), lambda i: (0, i)),   # xT tile (pipelined)
            pl.BlockSpec((H, D), lambda i: (0, 0)),    # w1 resident
            pl.BlockSpec((H, 1), lambda i: (0, 0)),    # b1 resident
            pl.BlockSpec((D, H), lambda i: (0, 0)),    # w2 resident
            pl.BlockSpec((D, 1), lambda i: (0, 0)),    # b2 resident
        ],
        out_specs=(
            pl.BlockSpec((H, TB), lambda i: (0, i)),   # encT tile (lane-dense)
            pl.BlockSpec((D, TB), lambda i: (0, i)),   # decT tile (lane-dense)
        ),
        compiler_params=pltpu.CompilerParams(
            dimension_semantics=("parallel",),         # batch tiles -> both TCs
            # Double-buffered xT/encT/decT at tb_max is ~8 MiB; 32 MiB leaves
            # ample headroom and is legal on v5e/v6e/v7x physical VMEM.
            vmem_limit_bytes=32 * 1024 * 1024,
        ),
        cost_estimate=cost,
    )(xt, w1, b1_col, w2, b2_col)


def autoencoder_forward(x, w1, b1, w2, b2, *, tb_max=16384):
    """Torch-facing API: x (B, input_size) -> (encoded (B, hidden),
    decoded (B, input_size)).  Callers that can consume batch-on-lanes
    activations should use autoencoder_forward_t directly and skip the
    wrapper transposes."""
    enct, dect = autoencoder_forward_t(x.T, w1, b1, w2, b2, tb_max=tb_max)
    return enct.T, dect.T


def _reference(x, w1, b1, w2, b2):
    enc = jax.nn.relu(x @ w1.T + b1)
    dec = jax.nn.sigmoid(enc @ w2.T + b2)
    return enc, dec


if __name__ == "__main__":
    INPUT_SIZE, HIDDEN_SIZE = 16, 32

    key = jax.random.PRNGKey(0)
    kx, kw1, kb1, kw2, kb2, kx2 = jax.random.split(key, 6)

    # Deterministic synthetic parameters (torch Linear layout: (out, in)).
    w1 = jax.random.normal(kw1, (HIDDEN_SIZE, INPUT_SIZE), dtype=jnp.float32) * 0.1
    b1 = jax.random.normal(kb1, (HIDDEN_SIZE,), dtype=jnp.float32) * 0.1
    w2 = jax.random.normal(kw2, (INPUT_SIZE, HIDDEN_SIZE), dtype=jnp.float32) * 0.1
    b2 = jax.random.normal(kb2, (INPUT_SIZE,), dtype=jnp.float32) * 0.1

    # --- small case (single grid step, full-batch tile) ---
    B = 2
    x = jax.random.normal(kx, (B, INPUT_SIZE), dtype=jnp.float32)
    encoded, decoded = autoencoder_forward(x, w1, b1, w2, b2)
    jax.block_until_ready((encoded, decoded))

    enc_ref, dec_ref = _reference(x, w1, b1, w2, b2)
    assert encoded.shape == (B, HIDDEN_SIZE)
    assert decoded.shape == (B, INPUT_SIZE)
    assert jnp.allclose(encoded, enc_ref, atol=1e-5)
    assert jnp.allclose(decoded, dec_ref, atol=1e-5)

    # --- larger batch: exercises the multi-step pipelined, lane-dense path ---
    B2 = 1024
    x2 = jax.random.normal(kx2, (B2, INPUT_SIZE), dtype=jnp.float32)
    enc2, dec2 = autoencoder_forward(x2, w1, b1, w2, b2)
    jax.block_until_ready((enc2, dec2))

    enc2_ref, dec2_ref = _reference(x2, w1, b1, w2, b2)
    assert enc2.shape == (B2, HIDDEN_SIZE)
    assert dec2.shape == (B2, INPUT_SIZE)
    assert jnp.allclose(enc2, enc2_ref, atol=1e-5)
    assert jnp.allclose(dec2, dec2_ref, atol=1e-5)

    print("KERNEL_OK")
</pallas_src>

<mosaic_0001>
module attributes {stable_mosaic.version = 11 : i64} {
  func.func @autoencoder_kernel(%arg0: i32, %arg1: memref<16x2xf32, #tpu.memory_space<vmem>>, %arg2: memref<32x16xf32, #tpu.memory_space<vmem>>, %arg3: memref<32x1xf32, #tpu.memory_space<vmem>>, %arg4: memref<16x32xf32, #tpu.memory_space<vmem>>, %arg5: memref<16x1xf32, #tpu.memory_space<vmem>>, %arg6: memref<32x2xf32, #tpu.memory_space<vmem>>, %arg7: memref<16x2xf32, #tpu.memory_space<vmem>>) attributes {dimension_semantics = [#tpu.dimension_semantics<parallel>], iteration_bounds = array<i64: 1>, scalar_prefetch = 0 : i64, scratch_operands = 0 : i64, tpu.core_type = #tpu.core_type<tc>, window_params = [{transform_indices = @transform_0, window_bounds = array<i64: 16, 2>}, {pipeline_mode = #tpu.pipeline_mode<synchronous>, transform_indices = @transform_1, window_bounds = array<i64: 32, 16>}, {pipeline_mode = #tpu.pipeline_mode<synchronous>, transform_indices = @transform_2, window_bounds = array<i64: 32, 1>}, {pipeline_mode = #tpu.pipeline_mode<synchronous>, transform_indices = @transform_3, window_bounds = array<i64: 16, 32>}, {pipeline_mode = #tpu.pipeline_mode<synchronous>, transform_indices = @transform_4, window_bounds = array<i64: 16, 1>}, {transform_indices = @transform_5, window_bounds = array<i64: 32, 2>}, {transform_indices = @transform_6, window_bounds = array<i64: 16, 2>}]} {
    %c0 = arith.constant 0 : index
    %c0_0 = arith.constant 0 : index
    %0 = vector.load %arg1[%c0, %c0_0] : memref<16x2xf32, #tpu.memory_space<vmem>>, vector<16x2xf32>
    %c0_1 = arith.constant 0 : index
    %c0_2 = arith.constant 0 : index
    %1 = vector.load %arg2[%c0_1, %c0_2] : memref<32x16xf32, #tpu.memory_space<vmem>>, vector<32x16xf32>
    %cst = arith.constant dense<0.000000e+00> : vector<32x2xf32>
    %2 = tpu.matmul %1, %0, %cst {dimension_numbers = #tpu.dot_dimension_numbers<[1], [0], [0], [1], [0, 0, 1, 1], [], []>} : vector<32x16xf32>, vector<16x2xf32>, vector<32x2xf32> -> vector<32x2xf32>
    %c0_3 = arith.constant 0 : index
    %c0_4 = arith.constant 0 : index
    %3 = vector.load %arg3[%c0_3, %c0_4] : memref<32x1xf32, #tpu.memory_space<vmem>>, vector<32x1xf32>
    %4 = vector.broadcast %3 : vector<32x1xf32> to vector<32x2xf32>
    %5 = arith.addf %2, %4 : vector<32x2xf32>
    %cst_5 = arith.constant 0.000000e+00 : f32
    %6 = vector.broadcast %cst_5 : f32 to vector<32x2xf32>
    %7 = arith.maximumf %5, %6 : vector<32x2xf32>
    %c0_6 = arith.constant 0 : index
    %c0_7 = arith.constant 0 : index
    %8 = vector.load %arg6[%c0_6, %c0_7] : memref<32x2xf32, #tpu.memory_space<vmem>>, vector<32x2xf32>
    tpu.vector_store %arg6[%c0_6, %c0_7], %7 {strides = array<i32>} : memref<32x2xf32, #tpu.memory_space<vmem>>, vector<32x2xf32>,
    %c0_8 = arith.constant 0 : index
    %c0_9 = arith.constant 0 : index
    %9 = vector.load %arg4[%c0_8, %c0_9] : memref<16x32xf32, #tpu.memory_space<vmem>>, vector<16x32xf32>
    %cst_10 = arith.constant dense<0.000000e+00> : vector<16x2xf32>
    %10 = tpu.matmul %9, %7, %cst_10 {dimension_numbers = #tpu.dot_dimension_numbers<[1], [0], [0], [1], [0, 0, 1, 1], [], []>} : vector<16x32xf32>, vector<32x2xf32>, vector<16x2xf32> -> vector<16x2xf32>
    %c0_11 = arith.constant 0 : index
    %c0_12 = arith.constant 0 : index
    %11 = vector.load %arg5[%c0_11, %c0_12] : memref<16x1xf32, #tpu.memory_space<vmem>>, vector<16x1xf32>
    %12 = vector.broadcast %11 : vector<16x1xf32> to vector<16x2xf32>
    %13 = arith.addf %10, %12 : vector<16x2xf32>
    %cst_13 = arith.constant 0.000000e+00 : f32
    %14 = vector.broadcast %cst_13 : f32 to vector<16x2xf32>
    %15 = arith.subf %14, %13 : vector<16x2xf32>
    %16 = math.exp %15 : vector<16x2xf32>
    %cst_14 = arith.constant 1.000000e+00 : f32
    %17 = vector.broadcast %cst_14 : f32 to vector<16x2xf32>
    %18 = arith.addf %17, %16 : vector<16x2xf32>
    %cst_15 = arith.constant 1.000000e+00 : f32
    %19 = vector.broadcast %cst_15 : f32 to vector<16x2xf32>
    %20 = arith.divf %19, %18 : vector<16x2xf32>
    %c0_16 = arith.constant 0 : index
    %c0_17 = arith.constant 0 : index
    %21 = vector.load %arg7[%c0_16, %c0_17] : memref<16x2xf32, #tpu.memory_space<vmem>>, vector<16x2xf32>
    tpu.vector_store %arg7[%c0_16, %c0_17], %20 {strides = array<i32>} : memref<16x2xf32, #tpu.memory_space<vmem>>, vector<16x2xf32>,
    return
  }
  func.func @transform_0(%arg0: i32) -> (i32, i32) {
    %c0_i32 = arith.constant 0 : i32
    %c0_i32_0 = arith.constant 0 : i32
    return %c0_i32, %arg0 : i32, i32
  }
  func.func @transform_1(%arg0: i32) -> (i32, i32) {
    %c0_i32 = arith.constant 0 : i32
    %c0_i32_0 = arith.constant 0 : i32
    %c0_i32_1 = arith.constant 0 : i32
    return %c0_i32, %c0_i32_0 : i32, i32
  }
  func.func @transform_2(%arg0: i32) -> (i32, i32) {
    %c0_i32 = arith.constant 0 : i32
    %c0_i32_0 = arith.constant 0 : i32
    %c0_i32_1 = arith.constant 0 : i32
    return %c0_i32, %c0_i32_0 : i32, i32
  }
  func.func @transform_3(%arg0: i32) -> (i32, i32) {
    %c0_i32 = arith.constant 0 : i32
    %c0_i32_0 = arith.constant 0 : i32
    %c0_i32_1 = arith.constant 0 : i32
    return %c0_i32, %c0_i32_0 : i32, i32
  }
  func.func @transform_4(%arg0: i32) -> (i32, i32) {
    %c0_i32 = arith.constant 0 : i32
    %c0_i32_0 = arith.constant 0 : i32
    %c0_i32_1 = arith.constant 0 : i32
    return %c0_i32, %c0_i32_0 : i32, i32
  }
  func.func @transform_5(%arg0: i32) -> (i32, i32) {
    %c0_i32 = arith.constant 0 : i32
    %c0_i32_0 = arith.constant 0 : i32
    return %c0_i32, %arg0 : i32, i32
  }
  func.func @transform_6(%arg0: i32) -> (i32, i32) {
    %c0_i32 = arith.constant 0 : i32
    %c0_i32_0 = arith.constant 0 : i32
    return %c0_i32, %arg0 : i32, i32
  }
}

</mosaic_0001>

<llo_original>
// kernel: tpu_custom_call.1
$region0: #{tpu_custom_call.1}
  #allocation0 [shape = 'u32[]', space=smem, size = 0x4, offset = 0x4, fixed_abs, tag = 'smem constant byte address 0x4 - core index']
  #allocation1 [shape = 'u32[144,128]{1,0:T(1,128)}', space=vmem, size = 0x12000, scoped, tag = 'internal scratch']
  %s0 = inlined_call_operand.vmem [shape: f32[16,2], index: 0, kind: input, shape index: {}]
  %s1 = inlined_call_operand.vmem [shape: f32[32,16], index: 1, kind: input, shape index: {}]
  %s2 = inlined_call_operand.vmem [shape: f32[32,1], index: 2, kind: input, shape index: {}]
  %s3 = inlined_call_operand.vmem [shape: f32[16,32], index: 3, kind: input, shape index: {}]
  %s4 = inlined_call_operand.vmem [shape: f32[16,1], index: 4, kind: input, shape index: {}]
  %s5 = inlined_call_operand.vmem [shape: f32[32,2], index: 5, kind: output, shape index: {0}]
  %s6 = inlined_call_operand.vmem [shape: f32[16,2], index: 6, kind: output, shape index: {1}]
  %7 = xla_tuple %s5, %s6
  %s8 = sld [smem:[#allocation0]]
  $region38: #{tpu_custom_call.1} parent=0
    _
  %s10 = ssub.s32 1, %s8
  %s11 = scalar_select 0, %s10, %s8
  // Predicated region
  $region2: #{tpu_custom_call.1} parent=0 // pred_check
    _
  $region3: #{tpu_custom_call.1} parent=0 // pred_check_branch
    %13 = sbr.rel (0) target = $region5
  $region4: #{tpu_custom_call.1} parent=0 // pred_region
    _
  $region5: #{tpu_custom_call.1} parent=0 // pred_fallthru
    _
  // Predicated region
  $region6: #{tpu_custom_call.1} parent=0 // pred_check
    _
  $region7: #{tpu_custom_call.1} parent=0 // pred_check_branch
    %15 = sbr.rel (0) target = $region9
  $region8: #{tpu_custom_call.1} parent=0 // pred_region
    _
  $region9: #{tpu_custom_call.1} parent=0 // pred_fallthru
    _
  // Predicated region
  $region10: #{tpu_custom_call.1} parent=0 // pred_check
    _
  $region11: #{tpu_custom_call.1} parent=0 // pred_check_branch
    %17 = sbr.rel (0) target = $region13
  $region12: #{tpu_custom_call.1} parent=0 // pred_region
    _
  $region13: #{tpu_custom_call.1} parent=0 // pred_fallthru
    _
  // Predicated region
  $region14: #{tpu_custom_call.1} parent=0 // pred_check
    _
  $region15: #{tpu_custom_call.1} parent=0 // pred_check_branch
    %19 = sbr.rel (0) target = $region17
  $region16: #{tpu_custom_call.1} parent=0 // pred_region
    _
  $region17: #{tpu_custom_call.1} parent=0 // pred_fallthru
    _
  // Predicated region
  $region18: #{tpu_custom_call.1} parent=0 // pred_check
    _
  $region19: #{tpu_custom_call.1} parent=0 // pred_check_branch
    %21 = sbr.rel (0) target = $region21
  $region20: #{tpu_custom_call.1} parent=0 // pred_region
    _
  $region21: #{tpu_custom_call.1} parent=0 // pred_fallthru
    _
  %v22 = vld [vmem:[%s0] sm:$0xff]
  %v23 = vld [vmem:[%s0 + $0x8] sm:$0xff]
  %v24 = vld [vmem:[%s1] sm:$0xff]
  %v25 = vld [vmem:[%s1 + $0x8] sm:$0xff]
  %v26 = vld [vmem:[%s1 + $0x10] sm:$0xff]
  %v27 = vld [vmem:[%s1 + $0x18] sm:$0xff]
  %v28 = vld [vmem:[%s2] sm:$0xff]
  %v29 = vld [vmem:[%s2 + $0x8] sm:$0xff]
  %v30 = vld [vmem:[%s2 + $0x10] sm:$0xff]
  %v31 = vld [vmem:[%s2 + $0x18] sm:$0xff]
  %33 = vset.pattern.permute.xlu0 0
  %34 = vperm.xlu0 %33, %v28
  %v35 = vpop.permute.xlu0 %34
  %38 = vset.pattern.permute.xlu0 0
  %39 = vperm.xlu0 %38, %v29
  %v40 = vpop.permute.xlu0 %39
  %43 = vset.pattern.permute.xlu0 0
  %44 = vperm.xlu0 %43, %v30
  %v45 = vpop.permute.xlu0 %44
  %48 = vset.pattern.permute.xlu0 0
  %49 = vperm.xlu0 %48, %v31
  %v50 = vpop.permute.xlu0 %49
  %vm52 = vcmask 130048
  %v54 = vsel %vm52, %v24, 0
  %v57 = vsel %vm52, %v25, 0
  %v60 = vsel %vm52, %v26, 0
  %v63 = vsel %vm52, %v27, 0
  %65 = vmatprep.subr.mxu0 0.0
  %66 = vmatpush1.msra.mxu0 %v22
  %67 = vmatprep.subr.mxu0 0.0
  %68 = vmatpush1.msra.mxu0 %v23
  %69 = vmatprep.subr.mxu0 0.0
  %70 = vmatpush1.msra.mxu0 0.0
  %71 = vmatprep.subr.mxu0 0.0
  %72 = vmatpush1.msra.mxu0 0.0
  %73 = vmatprep.subr.mxu0 0.0
  %74 = vmatpush1.msra.mxu0 0.0
  %75 = vmatprep.subr.mxu0 0.0
  %76 = vmatpush1.msra.mxu0 0.0
  %77 = vmatprep.subr.mxu0 0.0
  %78 = vmatpush1.msra.mxu0 0.0
  %79 = vmatprep.subr.mxu0 0.0
  %80 = vmatpush1.msra.mxu0 0.0
  %81 = vmatprep.subr.mxu0 0.0
  %82 = vmatpush1.msra.mxu0 0.0
  %83 = vmatprep.subr.mxu0 0.0
  %84 = vmatpush1.msra.mxu0 0.0
  %85 = vmatprep.subr.mxu0 0.0
  %86 = vmatpush1.msra.mxu0 0.0
  %87 = vmatprep.subr.mxu0 0.0
  %88 = vmatpush1.msra.mxu0 0.0
  %89 = vmatprep.subr.mxu0 0.0
  %90 = vmatpush1.msra.mxu0 0.0
  %91 = vmatprep.subr.mxu0 0.0
  %92 = vmatpush1.msra.mxu0 0.0
  %93 = vmatprep.subr.mxu0 0.0
  %94 = vmatpush1.msra.mxu0 0.0
  %95 = vmatprep.subr.mxu0 0.0
  %96 = vmatpush1.msra.mxu0 0.0
  %97 = vmatprep.subr.mxu0 0.0
  %98 = vmatpush1.msra.mxu0 0.0
  %99 = vmatprep.subr.mxu0 0.0
  %100 = vmatpush1.msra.mxu0 0.0
  %101 = vmatprep.subr.mxu0 0.0
  %102 = vmatpush1.msra.mxu0 0.0
  %103 = vmatprep.subr.mxu0 0.0
  %104 = vmatpush1.msra.mxu0 0.0
  %105 = vmatprep.subr.mxu0 0.0
  %106 = vmatpush1.msra.mxu0 0.0
  %107 = vmatprep.subr.mxu0 0.0
  %108 = vmatpush1.msra.mxu0 0.0
  %109 = vmatprep.subr.mxu0 0.0
  %110 = vmatpush1.msra.mxu0 0.0
  %111 = vmatprep.subr.mxu0 0.0
  %112 = vmatpush1.msra.mxu0 0.0
  %113 = vmatprep.subr.mxu0 0.0
  %114 = vmatpush1.msra.mxu0 0.0
  %115 = vmatprep.subr.mxu0 0.0
  %116 = vmatpush1.msra.mxu0 0.0
  %117 = vmatprep.subr.mxu0 0.0
  %118 = vmatpush1.msra.mxu0 0.0
  %119 = vmatprep.subr.mxu0 0.0
  %120 = vmatpush1.msra.mxu0 0.0
  %121 = vmatprep.subr.mxu0 0.0
  %122 = vmatpush1.msra.mxu0 0.0
  %123 = vmatprep.subr.mxu0 0.0
  %124 = vmatpush1.msra.mxu0 0.0
  %125 = vmatprep.subr.mxu0 0.0
  %126 = vmatpush1.msra.mxu0 0.0
  %127 = vmatprep.subr.mxu0 0.0
  %128 = vmatpush1.msra.mxu0 0.0
  %129 = vmatprep.mubr.f32.mxu0 0.0
  %130 = vmatmul.mubr.f32.gmra.mrb[0].mxu0 %v54
  %v131 = vpop.f32.mrb[0].mxu0
  %v132 = vadd.f32 %v35, %v131
  %v133 = vpop.f32.mrb[0].mxu0
  %134 = vmatprep.mubr.f32.mxu0 0.0
  %135 = vmatmul.mubr.f32.gmra.mrb[0].mxu0 %v57
  %v136 = vpop.f32.mrb[0].mxu0
  %v137 = vadd.f32 %v40, %v136
  %v138 = vpop.f32.mrb[0].mxu0
  %139 = vmatprep.mubr.f32.mxu0 0.0
  %140 = vmatmul.mubr.f32.gmra.mrb[0].mxu0 %v60
  %v141 = vpop.f32.mrb[0].mxu0
  %v142 = vadd.f32 %v45, %v141
  %v143 = vpop.f32.mrb[0].mxu0
  %144 = vmatprep.mubr.f32.mxu0 0.0
  %145 = vmatmul.mubr.f32.gmra.mrb[0].mxu0 %v63
  %v146 = vpop.f32.mrb[0].mxu0
  %v147 = vadd.f32 %v50, %v146
  %v148 = vpop.f32.mrb[0].mxu0
  %149 = vdwg.mxu0
  %v150 = vmax.f32 %v132, 0.0
  %v151 = vmax.f32 %v137, 0.0
  %v152 = vmax.f32 %v142, 0.0
  %v153 = vmax.f32 %v147, 0.0
  %vm154 = vcmask 15360
  %155 = vst.msk [vmem:[%s5] sm:$0xff] %vm154, %v150
  %156 = vst.msk [vmem:[%s5 + $0x8] sm:$0xff] %vm154, %v151
  %157 = vst.msk [vmem:[%s5 + $0x10] sm:$0xff] %vm154, %v152
  %158 = vst.msk [vmem:[%s5 + $0x18] sm:$0xff] %vm154, %v153
  %v159 = vld [vmem:[%s3] sm:$0xff]
  %v160 = vld [vmem:[%s3 + $0x8] sm:$0xff]
  %v161 = vld [vmem:[%s4] sm:$0xff]
  %v162 = vld [vmem:[%s4 + $0x8] sm:$0xff]
  %164 = vset.pattern.permute.xlu0 0
  %165 = vperm.xlu0 %164, %v161
  %v166 = vpop.permute.xlu0 %165
  %169 = vset.pattern.permute.xlu0 0
  %170 = vperm.xlu0 %169, %v162
  %v171 = vpop.permute.xlu0 %170
  %vm173 = vcmask 261120
  %v175 = vsel %vm173, %v159, 0
  %v178 = vsel %vm173, %v160, 0
  %180 = vmatprep.subr.mxu0 0.0
  %181 = vmatpush1.msra.mxu0 %v150
  %182 = vmatprep.subr.mxu0 0.0
  %183 = vmatpush1.msra.mxu0 %v151
  %184 = vmatprep.subr.mxu0 0.0
  %185 = vmatpush1.msra.mxu0 %v152
  %186 = vmatprep.subr.mxu0 0.0
  %187 = vmatpush1.msra.mxu0 %v153
  %188 = vmatprep.subr.mxu0 0.0
  %189 = vmatpush1.msra.mxu0 0.0
  %190 = vmatprep.subr.mxu0 0.0
  %191 = vmatpush1.msra.mxu0 0.0
  %192 = vmatprep.subr.mxu0 0.0
  %193 = vmatpush1.msra.mxu0 0.0
  %194 = vmatprep.subr.mxu0 0.0
  %195 = vmatpush1.msra.mxu0 0.0
  %196 = vmatprep.subr.mxu0 0.0
  %197 = vmatpush1.msra.mxu0 0.0
  %198 = vmatprep.subr.mxu0 0.0
  %199 = vmatpush1.msra.mxu0 0.0
  %200 = vmatprep.subr.mxu0 0.0
  %201 = vmatpush1.msra.mxu0 0.0
  %202 = vmatprep.subr.mxu0 0.0
  %203 = vmatpush1.msra.mxu0 0.0
  %204 = vmatprep.subr.mxu0 0.0
  %205 = vmatpush1.msra.mxu0 0.0
  %206 = vmatprep.subr.mxu0 0.0
  %207 = vmatpush1.msra.mxu0 0.0
  %208 = vmatprep.subr.mxu0 0.0
  %209 = vmatpush1.msra.mxu0 0.0
  %210 = vmatprep.subr.mxu0 0.0
  %211 = vmatpush1.msra.mxu0 0.0
  %212 = vmatprep.subr.mxu0 0.0
  %213 = vmatpush1.msra.mxu0 0.0
  %214 = vmatprep.subr.mxu0 0.0
  %215 = vmatpush1.msra.mxu0 0.0
  %216 = vmatprep.subr.mxu0 0.0
  %217 = vmatpush1.msra.mxu0 0.0
  %218 = vmatprep.subr.mxu0 0.0
  %219 = vmatpush1.msra.mxu0 0.0
  %220 = vmatprep.subr.mxu0 0.0
  %221 = vmatpush1.msra.mxu0 0.0
  %222 = vmatprep.subr.mxu0 0.0
  %223 = vmatpush1.msra.mxu0 0.0
  %224 = vmatprep.subr.mxu0 0.0
  %225 = vmatpush1.msra.mxu0 0.0
  %226 = vmatprep.subr.mxu0 0.0
  %227 = vmatpush1.msra.mxu0 0.0
  %228 = vmatprep.subr.mxu0 0.0
  %229 = vmatpush1.msra.mxu0 0.0
  %230 = vmatprep.subr.mxu0 0.0
  %231 = vmatpush1.msra.mxu0 0.0
  %232 = vmatprep.subr.mxu0 0.0
  %233 = vmatpush1.msra.mxu0 0.0
  %234 = vmatprep.subr.mxu0 0.0
  %235 = vmatpush1.msra.mxu0 0.0
  %236 = vmatprep.subr.mxu0 0.0
  %237 = vmatpush1.msra.mxu0 0.0
  %238 = vmatprep.subr.mxu0 0.0
  %239 = vmatpush1.msra.mxu0 0.0
  %240 = vmatprep.subr.mxu0 0.0
  %241 = vmatpush1.msra.mxu0 0.0
  %242 = vmatprep.subr.mxu0 0.0
  %243 = vmatpush1.msra.mxu0 0.0
  %244 = vmatprep.mubr.f32.mxu0 0.0
  %245 = vmatmul.mubr.f32.gmra.mrb[0].mxu0 %v175
  %v246 = vpop.f32.mrb[0].mxu0
  %v247 = vadd.f32 %v166, %v246
  %v248 = vpop.f32.mrb[0].mxu0
  %249 = vmatprep.mubr.f32.mxu0 0.0
  %250 = vmatmul.mubr.f32.gmra.mrb[0].mxu0 %v178
  %v251 = vpop.f32.mrb[0].mxu0
  %v252 = vadd.f32 %v171, %v251
  %v253 = vpop.f32.mrb[0].mxu0
  %254 = vdwg.mxu0
  %v255 = vsub.f32 0.0, %v247
  %v256 = vsub.f32 0.0, %v252
  %v257 = vmul.f32 %v255, 1.442695
  %v258 = vpow.pop %v257
  %v259 = vmul.f32 %v256, 1.442695
  %v260 = vpow.pop %v259
  %v261 = vadd.f32 %v258, 1.0
  %v262 = vadd.f32 %v260, 1.0
  %v263 = vrcp.pop %v261
  %v264 = vmul.f32 1.0, %v263
  %v265 = vrcp.pop %v262
  %v266 = vmul.f32 1.0, %v265
  %267 = vst.msk [vmem:[%s6] sm:$0xff] %vm154, %v264
  %268 = vst.msk [vmem:[%s6 + $0x8] sm:$0xff] %vm154, %v266
  // Predicated region
  $region22: #{tpu_custom_call.1} parent=0 // pred_check
    _
  $region23: #{tpu_custom_call.1} parent=0 // pred_check_branch
    %270 = sbr.rel (0) target = $region25
  $region24: #{tpu_custom_call.1} parent=0 // pred_region
    _
  $region25: #{tpu_custom_call.1} parent=0 // pred_fallthru
    _
  // Predicated region
  $region26: #{tpu_custom_call.1} parent=0 // pred_check
    _
  $region27: #{tpu_custom_call.1} parent=0 // pred_check_branch
    %272 = sbr.rel (0) target = $region29
  $region28: #{tpu_custom_call.1} parent=0 // pred_region
    _
  $region29: #{tpu_custom_call.1} parent=0 // pred_fallthru
    _
  // Predicated region
  $region30: #{tpu_custom_call.1} parent=0 // pred_check
    _
  $region31: #{tpu_custom_call.1} parent=0 // pred_check_branch
    %274 = sbr.rel (0) target = $region33
  $region32: #{tpu_custom_call.1} parent=0 // pred_region
    _
  $region33: #{tpu_custom_call.1} parent=0 // pred_fallthru
    _
  // Predicated region
  $region34: #{tpu_custom_call.1} parent=0 // pred_check
    _
  $region35: #{tpu_custom_call.1} parent=0 // pred_check_branch
    %276 = sbr.rel (0) target = $region37
  $region36: #{tpu_custom_call.1} parent=0 // pred_region
    _
  $region37: #{tpu_custom_call.1} parent=0 // pred_fallthru
    _

</llo_original>
